<compile_context>
chip_gen: v7x
topology: tpu7x:2x2x1
jax: 0.10.0
libtpu: 0.0.40
codegen_flags: <defaults>
</compile_context>

<pallas_src>
import jax
import jax.numpy as jnp
import numpy as np
from jax.experimental import pallas as pl
from jax.experimental.pallas import tpu as pltpu  # noqa: F401  (TPU backend)

NUM_CLASSES = 20   # the module's [:, :20] slice forces num_classes == 20
INIT = 2.0


def _sig_t_kernel(a_ref, b_ref, ta_ref, tb_ref):
    a = a_ref[...]                       # (C, C) f32
    b = b_ref[...]                       # (C, C) f32

    # soft_modified[:, :20] += init * identity.
    # With C == 20 the first 20 columns of cat(A, B) are exactly the A block,
    # so the boost lands on A's diagonal. Single fused where.
    rows = jax.lax.broadcasted_iota(jnp.int32, a.shape, 0)
    cols = jax.lax.broadcasted_iota(jnp.int32, a.shape, 1)
    a = jnp.where(rows == cols, a + INIT, a)

    # Joint row softmax over the (virtual) concatenation [a | b] without
    # materializing it: shared row max, per-block exp, shared denominator.
    m = jnp.maximum(jnp.max(a, axis=1, keepdims=True),
                    jnp.max(b, axis=1, keepdims=True))      # (C, 1)
    ea = jnp.exp(a - m)                                      # (C, C)
    eb = jnp.exp(b - m)                                      # (C, C)
    denom = jnp.sum(ea, axis=1, keepdims=True) + jnp.sum(eb, axis=1, keepdims=True)
    inv = 1.0 / denom                                        # exact divide, (C, 1)

    ta_ref[...] = ea * inv
    tb_ref[...] = eb * inv


def sig_t_forward(A, B):
    C = A.shape[0]
    assert A.shape == (C, C) and B.shape == (C, C)
    assert C == NUM_CLASSES, "module hard-codes [:, :20], so num_classes must be 20"
    # Whole-array blocks (full array dims, so the (8,128) divisibility rule
    # does not apply). Grid-less single program; two (C, C) outputs so the
    # wrapper does not need any post-call slicing.
    full = pl.BlockSpec((C, C), lambda: (0, 0))
    ta, tb = pl.pallas_call(
        _sig_t_kernel,
        out_shape=(jax.ShapeDtypeStruct((C, C), jnp.float32),
                   jax.ShapeDtypeStruct((C, C), jnp.float32)),
        in_specs=[full, full],
        out_specs=(full, full),
    )(A, B)
    return ta, tb


def sig_t_reference(A, B):
    # Pure-jnp fallback (preferred when fused into a larger jit-compiled graph).
    C = A.shape[0]
    M = jnp.concatenate([A, B], axis=1)
    M = M.at[:, :20].add(INIT * jnp.eye(C, dtype=M.dtype))
    T = jax.nn.softmax(M, axis=1)
    return T[:, :C], T[:, C:]


if __name__ == "__main__":
    C = NUM_CLASSES
    # Parameters exactly as in sig_t.__init__: A = ones, B = zeros - 2.
    A = jnp.ones((C, C), dtype=jnp.float32)
    B = jnp.zeros((C, C), dtype=jnp.float32) - 2.0
    # forward() takes no tensor inputs; add a tiny deterministic perturbation
    # (PRNGKey(0)) so the row softmax is non-trivial (semantics unchanged).
    key = jax.random.PRNGKey(0)
    kA, kB = jax.random.split(key)
    A = A + 0.05 * jax.random.normal(kA, (C, C), dtype=jnp.float32)
    B = B + 0.05 * jax.random.normal(kB, (C, C), dtype=jnp.float32)

    ta, tb = sig_t_forward(A, B)
    jax.block_until_ready((ta, tb))

    ta_ref, tb_ref = sig_t_reference(A, B)
    np.testing.assert_allclose(np.asarray(ta), np.asarray(ta_ref), rtol=1e-5, atol=1e-6)
    np.testing.assert_allclose(np.asarray(tb), np.asarray(tb_ref), rtol=1e-5, atol=1e-6)
    # Rows of [T_A | T_B] must sum to 1.
    np.testing.assert_allclose(np.asarray(ta.sum(1) + tb.sum(1)), np.ones(C), rtol=1e-5)

    print("KERNEL_OK")
</pallas_src>

<mosaic_0001>
module attributes {stable_mosaic.version = 11 : i64} {
  func.func @_sig_t_kernel(%arg0: memref<20x20xf32, #tpu.memory_space<vmem>>, %arg1: memref<20x20xf32, #tpu.memory_space<vmem>>, %arg2: memref<20x20xf32, #tpu.memory_space<vmem>>, %arg3: memref<20x20xf32, #tpu.memory_space<vmem>>) attributes {dimension_semantics = [], scalar_prefetch = 0 : i64, scratch_operands = 0 : i64, tpu.core_type = #tpu.core_type<tc>} {
    %c0 = arith.constant 0 : index
    %c0_0 = arith.constant 0 : index
    %0 = vector.load %arg0[%c0, %c0_0] : memref<20x20xf32, #tpu.memory_space<vmem>>, vector<20x20xf32>
    %c0_1 = arith.constant 0 : index
    %c0_2 = arith.constant 0 : index
    %1 = vector.load %arg1[%c0_1, %c0_2] : memref<20x20xf32, #tpu.memory_space<vmem>>, vector<20x20xf32>
    %2 = tpu.iota {dimensions = array<i32: 0>} : vector<20x20xi32>
    %3 = tpu.iota {dimensions = array<i32: 1>} : vector<20x20xi32>
    %4 = arith.cmpi eq, %2, %3 : vector<20x20xi32>
    %cst = arith.constant 2.000000e+00 : f32
    %5 = vector.broadcast %cst : f32 to vector<20x20xf32>
    %6 = arith.addf %0, %5 : vector<20x20xf32>
    %7 = arith.select %4, %6, %0 : vector<20x20xi1>, vector<20x20xf32>
    %cst_3 = arith.constant dense<0xFF800000> : vector<20xf32>
    %8 = vector.multi_reduction <maximumf>, %7, %cst_3 [1] : vector<20x20xf32> to vector<20xf32>
    %9 = vector.shape_cast %8 : vector<20xf32> to vector<20x1xf32>
    %cst_4 = arith.constant dense<0xFF800000> : vector<20xf32>
    %10 = vector.multi_reduction <maximumf>, %1, %cst_4 [1] : vector<20x20xf32> to vector<20xf32>
    %11 = vector.shape_cast %10 : vector<20xf32> to vector<20x1xf32>
    %12 = arith.maximumf %9, %11 : vector<20x1xf32>
    %13 = vector.broadcast %12 : vector<20x1xf32> to vector<20x20xf32>
    %14 = arith.subf %7, %13 : vector<20x20xf32>
    %15 = math.exp %14 : vector<20x20xf32>
    %16 = vector.broadcast %12 : vector<20x1xf32> to vector<20x20xf32>
    %17 = arith.subf %1, %16 : vector<20x20xf32>
    %18 = math.exp %17 : vector<20x20xf32>
    %cst_5 = arith.constant dense<0.000000e+00> : vector<20xf32>
    %19 = vector.multi_reduction <add>, %15, %cst_5 [1] : vector<20x20xf32> to vector<20xf32>
    %20 = vector.shape_cast %19 : vector<20xf32> to vector<20x1xf32>
    %cst_6 = arith.constant dense<0.000000e+00> : vector<20xf32>
    %21 = vector.multi_reduction <add>, %18, %cst_6 [1] : vector<20x20xf32> to vector<20xf32>
    %22 = vector.shape_cast %21 : vector<20xf32> to vector<20x1xf32>
    %23 = arith.addf %20, %22 : vector<20x1xf32>
    %cst_7 = arith.constant 1.000000e+00 : f32
    %24 = vector.broadcast %cst_7 : f32 to vector<20x1xf32>
    %25 = arith.divf %24, %23 : vector<20x1xf32>
    %26 = vector.broadcast %25 : vector<20x1xf32> to vector<20x20xf32>
    %27 = arith.mulf %15, %26 : vector<20x20xf32>
    %c0_8 = arith.constant 0 : index
    %c0_9 = arith.constant 0 : index
    %28 = vector.load %arg2[%c0_8, %c0_9] : memref<20x20xf32, #tpu.memory_space<vmem>>, vector<20x20xf32>
    tpu.vector_store %arg2[%c0_8, %c0_9], %27 {strides = array<i32>} : memref<20x20xf32, #tpu.memory_space<vmem>>, vector<20x20xf32>,
    %29 = vector.broadcast %25 : vector<20x1xf32> to vector<20x20xf32>
    %30 = arith.mulf %18, %29 : vector<20x20xf32>
    %c0_10 = arith.constant 0 : index
    %c0_11 = arith.constant 0 : index
    %31 = vector.load %arg3[%c0_10, %c0_11] : memref<20x20xf32, #tpu.memory_space<vmem>>, vector<20x20xf32>
    tpu.vector_store %arg3[%c0_10, %c0_11], %30 {strides = array<i32>} : memref<20x20xf32, #tpu.memory_space<vmem>>, vector<20x20xf32>,
    return
  }
}

</mosaic_0001>

<llo_original>
// kernel: tpu_custom_call.1
$region0: #{tpu_custom_call.1}
  #allocation0 [shape = 'u32[]', space=smem, size = 0x4, offset = 0x4, fixed_abs, tag = 'smem constant byte address 0x4 - core index']
  #allocation1 [shape = 'u32[144,128]{1,0:T(1,128)}', space=vmem, size = 0x12000, scoped, tag = 'internal scratch']
  %s0 = inlined_call_operand.hbm [shape: f32[20,20], index: 0, kind: input, shape index: {}]
  %s1 = inlined_call_operand.hbm [shape: f32[20,20], index: 1, kind: input, shape index: {}]
  %s2 = inlined_call_operand.hbm [shape: f32[20,20], index: 2, kind: output, shape index: {0}]
  %s3 = inlined_call_operand.hbm [shape: f32[20,20], index: 3, kind: output, shape index: {1}]
  %4 = xla_tuple %s2, %s3
  %s5 = sld [smem:[#allocation0]]
  $region34: #{tpu_custom_call.1} parent=0
    _
  %s7 = ssub.s32 1, %s5
  %s8 = scalar_select 0, %s7, %s5
  $region1: #{tpu_custom_call.1} parent=0
    #allocation2 [shape = 'u8[12288]{0}', space=vmem, size = 0x3000, scoped, tag = 'input window, operand 0, single buffered']
    #allocation3 [shape = 's32[1]{0}', space=sflag, size = 0x4, scoped, tag = 'scoped memory for tpu_custom_call.1']
    #allocation4 [shape = 's32[1]{0}', space=sflag, size = 0x4, scoped, tag = 'scoped memory for tpu_custom_call.1']
    #allocation5 [shape = 'u8[12288]{0}', space=vmem, size = 0x3000, scoped, tag = 'input window, operand 1, single buffered']
    #allocation6 [shape = 's32[1]{0}', space=sflag, size = 0x4, scoped, tag = 'scoped memory for tpu_custom_call.1']
    #allocation7 [shape = 'u8[12288]{0}', space=vmem, size = 0x3000, scoped, tag = 'output window, operand 0, single buffered']
    #allocation8 [shape = 'u8[12288]{0}', space=vmem, size = 0x3000, scoped, tag = 'output window, operand 1, single buffered']
    #allocation9 [shape = 's32[1]{0}', space=sflag, size = 0x4, scoped, tag = 'scoped memory for tpu_custom_call.1']
    %9 = vsyncpa [#allocation3], 0
    %10 = vsyncpa [#allocation6], 0
    %11 = vsyncpa [#allocation4], 0
    %12 = vsyncpa [#allocation9], 0
    // Predicated region
    $region2: #{tpu_custom_call.1} parent=1 // pred_check
      _
    $region3: #{tpu_custom_call.1} parent=1 // pred_check_branch
      %14 = sbr.rel (0) target = $region5
    $region4: #{tpu_custom_call.1} parent=1 // pred_region
      %s16 = ssub.s32 384, 384
      %17 = vsyncadd [#allocation3], %s16
      %s18 = sshll.u32 [#allocation2], 4
      %s19 = int_to_ptr.vmem [resolvable:$true] %s18
      %24 = dma.hbm_to_vmem [thread:$0]  %s0, 384, %s19, [#allocation3], 128, 128, 8
    $region5: #{tpu_custom_call.1} parent=1 // pred_fallthru
      _
    // Predicated region
    $region6: #{tpu_custom_call.1} parent=1 // pred_check
      _
    $region7: #{tpu_custom_call.1} parent=1 // pred_check_branch
      %26 = sbr.rel (0) target = $region9
    $region8: #{tpu_custom_call.1} parent=1 // pred_region
      %s28 = ssub.s32 384, 384
      %29 = vsyncadd [#allocation6], %s28
      %s30 = sshll.u32 [#allocation5], 4
      %s31 = int_to_ptr.vmem [resolvable:$true] %s30
      %36 = dma.hbm_to_vmem [thread:$0]  %s1, 384, %s31, [#allocation6], 128, 128, 8
    $region9: #{tpu_custom_call.1} parent=1 // pred_fallthru
      _
    // Predicated region
    $region10: #{tpu_custom_call.1} parent=1 // pred_check
      _
    $region11: #{tpu_custom_call.1} parent=1 // pred_check_branch
      %38 = sbr.rel (0) target = $region13
    $region12: #{tpu_custom_call.1} parent=1 // pred_region
      %39 = dma.done [#allocation3], 384
    $region13: #{tpu_custom_call.1} parent=1 // pred_fallthru
      _
    // Predicated region
    $region14: #{tpu_custom_call.1} parent=1 // pred_check
      _
    $region15: #{tpu_custom_call.1} parent=1 // pred_check_branch
      %41 = sbr.rel (0) target = $region17
    $region16: #{tpu_custom_call.1} parent=1 // pred_region
      %42 = dma.done [#allocation6], 384
    $region17: #{tpu_custom_call.1} parent=1 // pred_fallthru
      _
    %v43 = vld [vmem:[#allocation2] sm:$0xff]
    %v44 = vld [vmem:[#allocation2 + $0x8] sm:$0xff]
    %v45 = vld [vmem:[#allocation2 + $0x10] sm:$0xf]
    %v46 = vld [vmem:[#allocation5] sm:$0xff]
    %v47 = vld [vmem:[#allocation5 + $0x8] sm:$0xff]
    %v48 = vld [vmem:[#allocation5 + $0x10] sm:$0xf]
    %v49 = vlaneseq
    %v50 = vshrl.u32 %v49, 7
    %v51 = vadd.s32 %v50, 8
    %v52 = vadd.s32 %v50, 16
    %v53 = vlaneseq
    %v54 = vand.u32 %v53, 127
    %vm55 = vcmp.eq.s32.totalorder %v50, %v54
    %vm56 = vcmp.eq.s32.totalorder %v51, %v54
    %vm57 = vcmp.eq.s32.totalorder %v52, %v54
    %v58 = vadd.f32 %v43, 2.0
    %v59 = vadd.f32 %v44, 2.0
    %v60 = vadd.f32 %v45, 2.0
    %v61 = vsel %vm55, %v58, %v43
    %v62 = vsel %vm56, %v59, %v44
    %v63 = vsel %vm57, %v60, %v45
    %vm64 = vcmask 162816
    %v65 = vsel %vm64, %v61, -inf
    %66 = vmax.xlane.f32.xlu0 %v65
    %v67 = vpop.xlane.xlu0 %66
    %v68 = vsel %vm64, %v62, -inf
    %69 = vmax.xlane.f32.xlu0 %v68
    %v70 = vpop.xlane.xlu0 %69
    %vm71 = vcmask 158720
    %v72 = vsel %vm71, %v63, -inf
    %73 = vmax.xlane.f32.xlu0 %v72
    %v74 = vpop.xlane.xlu0 %73
    %v75 = vsel %vm64, %v46, -inf
    %76 = vmax.xlane.f32.xlu0 %v75
    %v77 = vpop.xlane.xlu0 %76
    %v78 = vsel %vm64, %v47, -inf
    %79 = vmax.xlane.f32.xlu0 %v78
    %v80 = vpop.xlane.xlu0 %79
    %v81 = vsel %vm71, %v48, -inf
    %82 = vmax.xlane.f32.xlu0 %v81
    %v83 = vpop.xlane.xlu0 %82
    %v84 = vmax.f32 %v67, %v77
    %v85 = vmax.f32 %v70, %v80
    %v86 = vmax.f32 %v74, %v83
    %v87 = vsub.f32 %v61, %v84
    %v88 = vsub.f32 %v62, %v85
    %v89 = vsub.f32 %v63, %v86
    %v90 = vmul.f32 %v87, 1.442695
    %v91 = vpow.pop %v90
    %v92 = vmul.f32 %v88, 1.442695
    %v93 = vpow.pop %v92
    %v94 = vmul.f32 %v89, 1.442695
    %v95 = vpow.pop %v94
    %v96 = vsub.f32 %v46, %v84
    %v97 = vsub.f32 %v47, %v85
    %v98 = vsub.f32 %v48, %v86
    %v99 = vmul.f32 %v96, 1.442695
    %v100 = vpow.pop %v99
    %v101 = vmul.f32 %v97, 1.442695
    %v102 = vpow.pop %v101
    %v103 = vmul.f32 %v98, 1.442695
    %v104 = vpow.pop %v103
    %v105 = vsel %vm64, %v91, 0.0
    %106 = vadd.xlane.f32.xlu0 %v105
    %v107 = vpop.xlane.xlu0 %106
    %v108 = vsel %vm64, %v93, 0.0
    %109 = vadd.xlane.f32.xlu0 %v108
    %v110 = vpop.xlane.xlu0 %109
    %v111 = vsel %vm71, %v95, 0.0
    %112 = vadd.xlane.f32.xlu0 %v111
    %v113 = vpop.xlane.xlu0 %112
    %v114 = vsel %vm64, %v100, 0.0
    %115 = vadd.xlane.f32.xlu0 %v114
    %v116 = vpop.xlane.xlu0 %115
    %v117 = vsel %vm64, %v102, 0.0
    %118 = vadd.xlane.f32.xlu0 %v117
    %v119 = vpop.xlane.xlu0 %118
    %v120 = vsel %vm71, %v104, 0.0
    %121 = vadd.xlane.f32.xlu0 %v120
    %v122 = vpop.xlane.xlu0 %121
    %v123 = vadd.f32 %v107, %v116
    %v124 = vadd.f32 %v110, %v119
    %v125 = vadd.f32 %v113, %v122
    %v126 = vrcp.pop %v123
    %v127 = vmul.f32 1.0, %v126
    %v128 = vrcp.pop %v124
    %v129 = vmul.f32 1.0, %v128
    %v130 = vrcp.pop %v125
    %v131 = vmul.f32 1.0, %v130
    %v132 = vmul.f32 %v91, %v127
    %v133 = vmul.f32 %v93, %v129
    %v134 = vmul.f32 %v95, %v131
    %135 = vst.msk [vmem:[#allocation7] sm:$0xff] %vm64, %v132
    %136 = vst.msk [vmem:[#allocation7 + $0x8] sm:$0xff] %vm64, %v133
    %137 = vst.msk [vmem:[#allocation7 + $0x10] sm:$0xf] %vm71, %v134
    %v138 = vmul.f32 %v100, %v127
    %v139 = vmul.f32 %v102, %v129
    %v140 = vmul.f32 %v104, %v131
    %141 = vst.msk [vmem:[#allocation8] sm:$0xff] %vm64, %v138
    %142 = vst.msk [vmem:[#allocation8 + $0x8] sm:$0xff] %vm64, %v139
    %143 = vst.msk [vmem:[#allocation8 + $0x10] sm:$0xf] %vm71, %v140
    // Predicated region
    $region18: #{tpu_custom_call.1} parent=1 // pred_check
      _
    $region19: #{tpu_custom_call.1} parent=1 // pred_check_branch
      %145 = sbr.rel (0) target = $region21
    $region20: #{tpu_custom_call.1} parent=1 // pred_region
      %s147 = ssub.s32 384, 384
      %148 = vsyncadd [#allocation4], %s147
      %s149 = sshll.u32 [#allocation7], 4
      %s150 = int_to_ptr.vmem [resolvable:$true] %s149
      %155 = dma.vmem_to_hbm [thread:$0]  %s150, 384, %s2, [#allocation4], 128, 128, 8
    $region21: #{tpu_custom_call.1} parent=1 // pred_fallthru
      _
    // Predicated region
    $region22: #{tpu_custom_call.1} parent=1 // pred_check
      _
    $region23: #{tpu_custom_call.1} parent=1 // pred_check_branch
      %157 = sbr.rel (0) target = $region25
    $region24: #{tpu_custom_call.1} parent=1 // pred_region
      %s159 = ssub.s32 384, 384
      %160 = vsyncadd [#allocation9], %s159
      %s161 = sshll.u32 [#allocation8], 4
      %s162 = int_to_ptr.vmem [resolvable:$true] %s161
      %167 = dma.vmem_to_hbm [thread:$0]  %s162, 384, %s3, [#allocation9], 128, 128, 8
    $region25: #{tpu_custom_call.1} parent=1 // pred_fallthru
      _
    // Predicated region
    $region26: #{tpu_custom_call.1} parent=1 // pred_check
      _
    $region27: #{tpu_custom_call.1} parent=1 // pred_check_branch
      %169 = sbr.rel (0) target = $region29
    $region28: #{tpu_custom_call.1} parent=1 // pred_region
      %170 = dma.done [#allocation4], 384
    $region29: #{tpu_custom_call.1} parent=1 // pred_fallthru
      _
    // Predicated region
    $region30: #{tpu_custom_call.1} parent=1 // pred_check
      _
    $region31: #{tpu_custom_call.1} parent=1 // pred_check_branch
      %172 = sbr.rel (0) target = $region33
    $region32: #{tpu_custom_call.1} parent=1 // pred_region
      %173 = dma.done [#allocation9], 384
    $region33: #{tpu_custom_call.1} parent=1 // pred_fallthru
      _
    %174 = vsyncpa [#allocation3], 1
    %175 = vsyncpa [#allocation6], 1
    %176 = vsyncpa [#allocation4], 1
    %177 = vsyncpa [#allocation9], 1

</llo_original>
